<compile_context>
chip_gen: v7x
topology: tpu7x:2x2x1
jax: 0.10.0
libtpu: 0.0.40
codegen_flags: <defaults>
</compile_context>

<pallas_src>
import jax
import jax.numpy as jnp
from jax import lax
from jax.experimental import pallas as pl
from jax.experimental.pallas import tpu as pltpu

FEAT_DIM = 384     # encoder output channels ('transformer' / 'mamba3d' head)
HIDDEN = 128
OUT_CH = 23        # out_channels of the classification head
NUM_GROUP = 128    # transformer backbone num_groups -> `center` has this many points


def _round_up(x, m):
    return ((x + m - 1) // m) * m


def _cdiv(a, b):
    return (a + b - 1) // b


def _choose_tiles(B, N, *, target_points=2048, min_points=1024):
    """Pick (b_tile, tile_n): ~target_points points per grid step, while keeping
    >= 2 (preferably >= 4) grid steps so v7x's two TensorCores both get work."""
    if N <= target_points:
        tile_n = N                                   # whole cloud per step: block == full dim
        b_tile = max(1, min(B, target_points // max(N, 1)))
    else:
        tile_n = _round_up(target_points, 128)       # multiple of 128 -> ragged last block legal
        b_tile = 1

    def steps(bt, tn):
        return _cdiv(B, bt) * _cdiv(N, tn)

    # Hard requirement: >= 2 grid steps whenever the work exists (megacore sharding).
    while steps(b_tile, tile_n) < 2 and b_tile > 1:
        b_tile = max(1, b_tile // 2)
    while steps(b_tile, tile_n) < 2 and tile_n > 128:
        tile_n = max(128, _round_up(tile_n // 2, 128))
    # Soft preference: >= 4 steps, but never drop per-step work below ~min_points.
    while (steps(b_tile, tile_n) < 4 and b_tile > 1
           and (b_tile // 2) * tile_n >= min_points):
        b_tile = max(1, b_tile // 2)
    while (steps(b_tile, tile_n) < 4 and tile_n > 128
           and b_tile * max(128, _round_up(tile_n // 2, 128)) >= min_points):
        tile_n = max(128, _round_up(tile_n // 2, 128))
    return b_tile, tile_n


def _make_final_head_kernel(b_tile):
    """Fused Linear(384,128) -> ReLU -> Linear(128,23) with .permute(0,2,1) folded in.

    x_ref  : (b_tile, tile_n, 384)  f32 or bf16
    w1_ref : (384, 128)             bf16
    b1_ref : (1, 128)               f32
    w2t_ref: (23, 128)              bf16   (pre-transposed second Linear weight)
    b2_ref : (23, 1)                f32
    o_ref  : (b_tile, 23, tile_n)   f32    (lane-dense transposed tile)
    """
    def kernel(x_ref, w1_ref, b1_ref, w2t_ref, b2_ref, o_ref):
        w1 = w1_ref[...]
        b1 = b1_ref[...]
        w2t = w2t_ref[...]
        b2 = b2_ref[...]
        for b in range(b_tile):                 # static unroll; b_tile is small (<= ~16)
            x = x_ref[b].astype(jnp.bfloat16)                               # (tile_n, 384)
            h = jnp.dot(x, w1, preferred_element_type=jnp.float32)          # (tile_n, 128) f32
            h = jnp.maximum(h + b1, 0.0)                                    # bias + ReLU in f32
            # (23,128) x (tile_n,128) contracting dim1/dim1 -> (23, tile_n): the permute is
            # fused into the matmul itself (q.k^T pattern, no separate transpose pass).
            # TODO(synk): confirm via pl.lower_as_mlir that Mosaic does not insert an XLU
            #             transpose of `h` here (only matters if it lands on the critical path).
            y = lax.dot_general(w2t, h.astype(w2t.dtype),
                                dimension_numbers=(((1,), (1,)), ((), ())),
                                preferred_element_type=jnp.float32)
            o_ref[b] = (y + b2).astype(o_ref.dtype)
    return kernel


def final_head(x_feat, w1, b1, w2, b2, *, target_points=2048):
    """x_feat: (B, N, 384) f32/bf16 -> (B, 23, N) f32.

    The .permute(0, 2, 1) is fused into the kernel (lane-dense (23, tile_n) output tiles);
    no host-side pad, slice or cast pass over activations.
    """
    B, N, D = x_feat.shape
    assert D == FEAT_DIM

    b_tile, tile_n = _choose_tiles(B, N, target_points=target_points)
    grid = (_cdiv(B, b_tile), _cdiv(N, tile_n))

    # bf16 weights (MXU-native, tiny arrays); f32 biases added to the f32 accumulator.
    w1_bf = w1.astype(jnp.bfloat16)                              # (384, 128)
    w2t_bf = jnp.transpose(w2).astype(jnp.bfloat16)              # (23, 128)
    b1_f = jnp.reshape(b1, (1, HIDDEN)).astype(jnp.float32)
    b2_f = jnp.reshape(b2, (OUT_CH, 1)).astype(jnp.float32)

    # Advisory cost so XLA schedules surrounding ops (encoder epilogue) sensibly.
    flops = 2 * B * N * (FEAT_DIM * HIDDEN + HIDDEN * OUT_CH)
    bytes_accessed = (B * N * FEAT_DIM * x_feat.dtype.itemsize
                      + FEAT_DIM * HIDDEN * 2 + HIDDEN * 4
                      + OUT_CH * HIDDEN * 2 + OUT_CH * 4
                      + B * OUT_CH * N * 4)
    cost = pl.CostEstimate(flops=flops, transcendentals=0,
                           bytes_accessed=bytes_accessed)

    # Explicit VMEM budget with headroom (double-buffered in/out tiles + weights);
    # stays far under v7x's 64 MiB physical VMEM for the default target_points.
    x_tile_b = b_tile * tile_n * FEAT_DIM * x_feat.dtype.itemsize
    o_tile_b = b_tile * OUT_CH * tile_n * 4
    w_b = FEAT_DIM * HIDDEN * 2 + OUT_CH * HIDDEN * 2 + (HIDDEN + OUT_CH) * 4
    vmem_need = 2 * (x_tile_b + o_tile_b) + 2 * w_b + (2 << 20)
    vmem_limit = int(min(56 << 20, max(24 << 20, vmem_need)))

    out = pl.pallas_call(
        _make_final_head_kernel(b_tile),
        out_shape=jax.ShapeDtypeStruct((B, OUT_CH, N), jnp.float32),
        grid_spec=pltpu.PrefetchScalarGridSpec(
            num_scalar_prefetch=0,
            grid=grid,
            in_specs=[
                pl.BlockSpec((b_tile, tile_n, FEAT_DIM), lambda b, i: (b, i, 0)),
                pl.BlockSpec((FEAT_DIM, HIDDEN),         lambda b, i: (0, 0)),
                pl.BlockSpec((1, HIDDEN),                lambda b, i: (0, 0)),
                pl.BlockSpec((OUT_CH, HIDDEN),           lambda b, i: (0, 0)),
                pl.BlockSpec((OUT_CH, 1),                lambda b, i: (0, 0)),
            ],
            out_specs=pl.BlockSpec((b_tile, OUT_CH, tile_n), lambda b, i: (b, 0, i)),
        ),
        compiler_params=pltpu.CompilerParams(
            dimension_semantics=("parallel", "parallel"),
            vmem_limit_bytes=vmem_limit),
        cost_estimate=cost,
    )(x_feat, w1_bf, b1_f, w2t_bf, b2_f)
    return out


def init_final_params(key):
    """Deterministic init matching nn.Linear default (U[-1/sqrt(fan_in), 1/sqrt(fan_in)])."""
    k1, k2, k3, k4 = jax.random.split(key, 4)
    s1 = 1.0 / jnp.sqrt(FEAT_DIM)
    s2 = 1.0 / jnp.sqrt(HIDDEN)
    w1 = jax.random.uniform(k1, (FEAT_DIM, HIDDEN), jnp.float32, -s1, s1)
    b1 = jax.random.uniform(k2, (HIDDEN,),          jnp.float32, -s1, s1)
    w2 = jax.random.uniform(k3, (HIDDEN, OUT_CH),   jnp.float32, -s2, s2)
    b2 = jax.random.uniform(k4, (OUT_CH,),          jnp.float32, -s2, s2)
    return w1, b1, w2, b2


def point_feature_predictor_forward(x_points, params, key):
    """Mirrors PointFeaturePredictor.forward: returns (output, center).

    x_points: (B, N, 3) raw point cloud.
    Returns output: (B, 23, N), center: (B, NUM_GROUP, 3).
    """
    w1, b1, w2, b2 = params
    # TODO(synk): external backbone encoder (cfg.model.backbone_type) is out-of-repo;
    #             stand-in deterministic per-point features, emitted directly in bf16 so
    #             the Pallas head reads 2 B/elem (the cast fuses into the tanh epilogue).
    k_enc, _k_ctr = jax.random.split(key)
    enc_proj = jax.random.normal(k_enc, (3, FEAT_DIM), jnp.float32) * 0.1
    x_feat = jnp.tanh(x_points @ enc_proj).astype(jnp.bfloat16)   # (B, N, 384)
    center = x_points[:, :NUM_GROUP, :]                           # (B, 128, 3) stand-in centers

    # Pallas hot path: fused MLP head + permute(0,2,1) -> (B, 23, N).
    output = final_head(x_feat, w1, b1, w2, b2)
    return output, center


def _reference_head(x_feat_f32, params):
    """Plain-JAX reference with the same bf16 rounding of x / w1 / h / w2 as the kernel."""
    w1, b1, w2, b2 = params
    bf = lambda a: a.astype(jnp.bfloat16).astype(jnp.float32)
    h = jnp.maximum(bf(x_feat_f32) @ bf(w1) + b1.reshape(1, HIDDEN), 0.0)
    y = bf(h) @ bf(w2) + b2.reshape(1, OUT_CH)                    # (B, N, 23)
    return jnp.transpose(y, (0, 2, 1))                            # (B, 23, N)


if __name__ == "__main__":
    key = jax.random.PRNGKey(0)
    k_param, k_data, k_enc = jax.random.split(key, 3)
    params = init_final_params(k_param)

    # Two small cases: a ragged N (not a multiple of 128 -> exercises the masked last
    # output block, no jnp.pad) and a small-N case that triggers batch-axis blocking.
    for case, (B, N) in enumerate([(2, 200), (4, 128)]):
        k_case = jax.random.fold_in(k_data, case)
        x_points = jax.random.normal(k_case, (B, N, 3), jnp.float32)

        output, center = point_feature_predictor_forward(x_points, params, k_enc)
        output = jax.block_until_ready(output)
        center = jax.block_until_ready(center)

        # Reference (recompute the stand-in encoder features in f32).
        enc_proj = jax.random.normal(jax.random.split(k_enc)[0], (3, FEAT_DIM),
                                     jnp.float32) * 0.1
        x_feat = jnp.tanh(x_points @ enc_proj)
        ref = _reference_head(x_feat, params)

        assert output.shape == (B, OUT_CH, N), output.shape
        assert center.shape == (B, NUM_GROUP, 3), center.shape
        max_err = float(jnp.max(jnp.abs(output - ref)))
        assert jnp.allclose(output, ref, atol=1e-2, rtol=1e-2), max_err

    print("KERNEL_OK")
</pallas_src>

<mosaic_0001>
module attributes {stable_mosaic.version = 11 : i64} {
  func.func @kernel(%arg0: i32, %arg1: i32, %arg2: memref<1x200x384xbf16, #tpu.memory_space<vmem>>, %arg3: memref<384x128xbf16, #tpu.memory_space<vmem>>, %arg4: memref<1x128xf32, #tpu.memory_space<vmem>>, %arg5: memref<23x128xbf16, #tpu.memory_space<vmem>>, %arg6: memref<23x1xf32, #tpu.memory_space<vmem>>, %arg7: memref<1x23x200xf32, #tpu.memory_space<vmem>>) attributes {dimension_semantics = [#tpu.dimension_semantics<parallel>, #tpu.dimension_semantics<parallel>], iteration_bounds = array<i64: 2, 1>, scalar_prefetch = 0 : i64, scratch_operands = 0 : i64, tpu.core_type = #tpu.core_type<tc>, window_params = [{transform_indices = @transform_0, window_bounds = array<i64: 1, 200, 384>}, {pipeline_mode = #tpu.pipeline_mode<synchronous>, transform_indices = @transform_1, window_bounds = array<i64: 384, 128>}, {pipeline_mode = #tpu.pipeline_mode<synchronous>, transform_indices = @transform_2, window_bounds = array<i64: 1, 128>}, {pipeline_mode = #tpu.pipeline_mode<synchronous>, transform_indices = @transform_3, window_bounds = array<i64: 23, 128>}, {pipeline_mode = #tpu.pipeline_mode<synchronous>, transform_indices = @transform_4, window_bounds = array<i64: 23, 1>}, {transform_indices = @transform_5, window_bounds = array<i64: 1, 23, 200>}]} {
    %c0 = arith.constant 0 : index
    %c0_0 = arith.constant 0 : index
    %0 = vector.load %arg3[%c0, %c0_0] : memref<384x128xbf16, #tpu.memory_space<vmem>>, vector<384x128xbf16>
    %c0_1 = arith.constant 0 : index
    %c0_2 = arith.constant 0 : index
    %1 = vector.load %arg4[%c0_1, %c0_2] : memref<1x128xf32, #tpu.memory_space<vmem>>, vector<1x128xf32>
    %c0_3 = arith.constant 0 : index
    %c0_4 = arith.constant 0 : index
    %2 = vector.load %arg5[%c0_3, %c0_4] : memref<23x128xbf16, #tpu.memory_space<vmem>>, vector<23x128xbf16>
    %c0_5 = arith.constant 0 : index
    %c0_6 = arith.constant 0 : index
    %3 = vector.load %arg6[%c0_5, %c0_6] : memref<23x1xf32, #tpu.memory_space<vmem>>, vector<23x1xf32>
    %c0_7 = arith.constant 0 : index
    %c0_8 = arith.constant 0 : index
    %c0_9 = arith.constant 0 : index
    %4 = vector.load %arg2[%c0_7, %c0_8, %c0_9] : memref<1x200x384xbf16, #tpu.memory_space<vmem>>, vector<1x200x384xbf16>
    %5 = vector.shape_cast %4 : vector<1x200x384xbf16> to vector<200x384xbf16>
    %cst = arith.constant dense<0.000000e+00> : vector<200x128xf32>
    %6 = tpu.matmul %5, %0, %cst {dimension_numbers = #tpu.dot_dimension_numbers<[1], [0], [0], [1], [0, 0, 1, 1], [], []>} : vector<200x384xbf16>, vector<384x128xbf16>, vector<200x128xf32> -> vector<200x128xf32>
    %7 = vector.broadcast %1 : vector<1x128xf32> to vector<200x128xf32>
    %8 = arith.addf %6, %7 : vector<200x128xf32>
    %cst_10 = arith.constant 0.000000e+00 : f32
    %9 = vector.broadcast %cst_10 : f32 to vector<200x128xf32>
    %10 = arith.maximumf %8, %9 : vector<200x128xf32>
    %11 = arith.truncf %10 : vector<200x128xf32> to vector<200x128xbf16>
    %cst_11 = arith.constant dense<0.000000e+00> : vector<23x200xf32>
    %12 = tpu.matmul %2, %11, %cst_11 {dimension_numbers = #tpu.dot_dimension_numbers<[1], [1], [0], [0], [0, 0, 1, 0], [], []>} : vector<23x128xbf16>, vector<200x128xbf16>, vector<23x200xf32> -> vector<23x200xf32>
    %13 = vector.broadcast %3 : vector<23x1xf32> to vector<23x200xf32>
    %14 = arith.addf %12, %13 : vector<23x200xf32>
    %c0_12 = arith.constant 0 : index
    %c0_13 = arith.constant 0 : index
    %c0_14 = arith.constant 0 : index
    %15 = vector.load %arg7[%c0_12, %c0_13, %c0_14] : memref<1x23x200xf32, #tpu.memory_space<vmem>>, vector<1x23x200xf32>
    %16 = vector.shape_cast %15 : vector<1x23x200xf32> to vector<23x200xf32>
    %17 = vector.shape_cast %14 : vector<23x200xf32> to vector<1x23x200xf32>
    tpu.vector_store %arg7[%c0_12, %c0_13, %c0_14], %17 {strides = array<i32>} : memref<1x23x200xf32, #tpu.memory_space<vmem>>, vector<1x23x200xf32>,
    return
  }
  func.func @transform_0(%arg0: i32, %arg1: i32) -> (i32, i32, i32) {
    %c0_i32 = arith.constant 0 : i32
    %c0_i32_0 = arith.constant 0 : i32
    return %arg0, %arg1, %c0_i32 : i32, i32, i32
  }
  func.func @transform_1(%arg0: i32, %arg1: i32) -> (i32, i32) {
    %c0_i32 = arith.constant 0 : i32
    %c0_i32_0 = arith.constant 0 : i32
    %c0_i32_1 = arith.constant 0 : i32
    return %c0_i32, %c0_i32_0 : i32, i32
  }
  func.func @transform_2(%arg0: i32, %arg1: i32) -> (i32, i32) {
    %c0_i32 = arith.constant 0 : i32
    %c0_i32_0 = arith.constant 0 : i32
    %c0_i32_1 = arith.constant 0 : i32
    return %c0_i32, %c0_i32_0 : i32, i32
  }
  func.func @transform_3(%arg0: i32, %arg1: i32) -> (i32, i32) {
    %c0_i32 = arith.constant 0 : i32
    %c0_i32_0 = arith.constant 0 : i32
    %c0_i32_1 = arith.constant 0 : i32
    return %c0_i32, %c0_i32_0 : i32, i32
  }
  func.func @transform_4(%arg0: i32, %arg1: i32) -> (i32, i32) {
    %c0_i32 = arith.constant 0 : i32
    %c0_i32_0 = arith.constant 0 : i32
    %c0_i32_1 = arith.constant 0 : i32
    return %c0_i32, %c0_i32_0 : i32, i32
  }
  func.func @transform_5(%arg0: i32, %arg1: i32) -> (i32, i32, i32) {
    %c0_i32 = arith.constant 0 : i32
    %c0_i32_0 = arith.constant 0 : i32
    return %arg0, %c0_i32, %arg1 : i32, i32, i32
  }
}

</mosaic_0001>

<llo_original>
// kernel: tpu_custom_call.1
$region0: #{tpu_custom_call.1}
  #allocation0 [shape = 'u32[]', space=smem, size = 0x4, offset = 0x4, fixed_abs, tag = 'smem constant byte address 0x4 - core index']
  #allocation1 [shape = 'u32[144,128]{1,0:T(1,128)}', space=vmem, size = 0x12000, scoped, tag = 'internal scratch']
  %s0 = inlined_call_operand.hbm [shape: bf16[2,200,384], index: 0, kind: input, shape index: {}]
  %s1 = inlined_call_operand.hbm [shape: bf16[384,128], index: 1, kind: input, shape index: {}]
  %s2 = inlined_call_operand.vmem [shape: f32[1,128], index: 2, kind: input, shape index: {}]
  %s3 = inlined_call_operand.vmem [shape: bf16[23,128], index: 3, kind: input, shape index: {}]
  %s4 = inlined_call_operand.vmem [shape: f32[23,1], index: 4, kind: input, shape index: {}]
  %s5 = inlined_call_operand.vmem [shape: f32[2,23,200], index: 5, kind: output, shape index: {}]
  %s6 = sld [smem:[#allocation0]]
  $region61: #{tpu_custom_call.1} parent=0
    _
  %s8 = ssub.s32 1, %s6
  %s9 = scalar_select 0, %s8, %s6
  $region1: #{tpu_custom_call.1} parent=0
    #allocation2 [shape = 'u8[307200]{0}', space=vmem, size = 0x4b000, scoped, tag = 'input window, operand 0']
    #allocation3 [shape = 's32[2]{0}', space=sflag, size = 0x8, scoped, tag = 'scoped memory for tpu_custom_call.1']
    #allocation4 [shape = 'u8[98304]{0}', space=vmem, size = 0x18000, scoped, tag = 'input window, operand 1, single buffered']
    #allocation5 [shape = 's32[1]{0}', space=sflag, size = 0x4, scoped, tag = 'scoped memory for tpu_custom_call.1']
    %10 = vsyncpa [#allocation3], 0
    %s11 = scalar_lea.sflag [#allocation3], 1
    %12 = vsyncpa %s11, 0
    %13 = vsyncpa [#allocation5], 0
    loop: start=0, step=1, limit=4
    $region2: #{tpu_custom_call.1} parent=1 // loop_pre_header
      _
    $region3: #{tpu_custom_call.1} parent=1 // loop_header
      %s15 = sphi 0, %s19
      %p16 = scmp.ge.s32.totalorder %s15, 4
      %s22 = sphi 0, %s34
      %s23 = sphi 0, %s30
      %s24 = sphi 0, %s22
      %s25 = sphi 0, %s23
      %s26 = sphi 0, %s24
      %s27 = sphi 0, %s25
      %s39 = sphi 0, %s41
      %s42 = sphi 0, %s39
      %s43 = sphi 0, %s42
      %s59 = sphi 0, %s43
      %s63 = sphi 0, %s63
      %s65 = sphi 0, %s63
      %s66 = sphi 0, %s65
      %s80 = sphi 0, %s66
      %s84 = sphi 0, %s84
      %s86 = sphi 0, %s84
      %s87 = sphi 0, %s86
      %s101 = sphi 0, %s87
      %s105 = sphi 0, %s105
      %s107 = sphi 0, %s105
      %s108 = sphi 0, %s107
      %s122 = sphi 0, %s108
      %s126 = sphi 0, %s126
      %s128 = sphi 0, %s126
      %s129 = sphi 0, %s128
      %s143 = sphi 0, %s129
      %s151 = sphi 0, %s153
      %s154 = sphi 0, %s151
      %s155 = sphi 0, %s154
      %s171 = sphi 0, %s155
    $region4: #{tpu_custom_call.1} parent=1 // loop_header_branch
      %18 = sbr.rel (%p16) target = $region8
    $region5: #{tpu_custom_call.1} parent=1 // loop_body
      %s20 = ssub.s32 %s15, 1
      %s21 = ssub.s32 %s15, 2
      %s28 = sadd.s32 1, %s23
      %p29 = scmp.ge.s32.totalorder %s28, 1
      %s30 = scalar_select %p29, 0, %s28
      %s31 = sadd.s32 1, %s22
      %s32 = scalar_select %p29, %s31, %s22
      %p33 = scmp.ge.s32.totalorder %s32, 2
      %s34 = scalar_select %p33, 0, %s32
      %s35 = ssub.s32 %s22, %s34
      %s36 = ssub.s32 %s23, %s30
      %s37 = sor.u32 %s35, %s36
      %p38 = scmp.eq.s32.totalorder %s37, 0
      %s40 = sadd.s32 %s39, 1
      %s41 = scalar_select %p38, %s39, %s40
      %p44 = pneg %p38
      %p45 = scmp.eq.s32.totalorder %s15, 1
      %p46 = por %p44, %p45
      %p47 = scmp.ne.s32.totalorder %s39, %s42
      %p48 = scmp.eq.s32.totalorder %s15, 0
      %p49 = por %p47, %p48
      %p50 = scmp.ne.s32.totalorder %s39, %s42
      %p51 = scmp.eq.s32.totalorder %s20, 1
      %p52 = por %p50, %p51
      %p53 = scmp.ne.s32.totalorder %s42, %s43
      %p54 = scmp.eq.s32.totalorder %s20, 0
      %p55 = por %p53, %p54
      %p56 = scmp.ne.s32.totalorder %s42, %s43
      %p57 = scmp.eq.s32.totalorder %s21, 1
      %p58 = por %p56, %p57
      %p60 = scmp.ne.s32.totalorder %s43, %s59
      %p61 = scmp.eq.s32.totalorder %s21, 0
      %p62 = por %p60, %p61
      %s64 = sadd.s32 %s63, 1
      %p67 = scmp.eq.s32.totalorder %s15, 1
      %p68 = scmp.ne.s32.totalorder %s63, %s65
      %p69 = scmp.eq.s32.totalorder %s15, 0
      %p70 = por %p68, %p69
      %p71 = scmp.ne.s32.totalorder %s63, %s65
      %p72 = scmp.eq.s32.totalorder %s20, 1
      %p73 = por %p71, %p72
      %p74 = scmp.ne.s32.totalorder %s65, %s66
      %p75 = scmp.eq.s32.totalorder %s20, 0
      %p76 = por %p74, %p75
      %p77 = scmp.ne.s32.totalorder %s65, %s66
      %p78 = scmp.eq.s32.totalorder %s21, 1
      %p79 = por %p77, %p78
      %p81 = scmp.ne.s32.totalorder %s66, %s80
      %p82 = scmp.eq.s32.totalorder %s21, 0
      %p83 = por %p81, %p82
      %s85 = sadd.s32 %s84, 1
      %p88 = scmp.eq.s32.totalorder %s15, 1
      %p89 = scmp.ne.s32.totalorder %s84, %s86
      %p90 = scmp.eq.s32.totalorder %s15, 0
      %p91 = por %p89, %p90
      %p92 = scmp.ne.s32.totalorder %s84, %s86
      %p93 = scmp.eq.s32.totalorder %s20, 1
      %p94 = por %p92, %p93
      %p95 = scmp.ne.s32.totalorder %s86, %s87
      %p96 = scmp.eq.s32.totalorder %s20, 0
      %p97 = por %p95, %p96
      %p98 = scmp.ne.s32.totalorder %s86, %s87
      %p99 = scmp.eq.s32.totalorder %s21, 1
      %p100 = por %p98, %p99
      %p102 = scmp.ne.s32.totalorder %s87, %s101
      %p103 = scmp.eq.s32.totalorder %s21, 0
      %p104 = por %p102, %p103
      %s106 = sadd.s32 %s105, 1
      %p109 = scmp.eq.s32.totalorder %s15, 1
      %p110 = scmp.ne.s32.totalorder %s105, %s107
      %p111 = scmp.eq.s32.totalorder %s15, 0
      %p112 = por %p110, %p111
      %p113 = scmp.ne.s32.totalorder %s105, %s107
      %p114 = scmp.eq.s32.totalorder %s20, 1
      %p115 = por %p113, %p114
      %p116 = scmp.ne.s32.totalorder %s107, %s108
      %p117 = scmp.eq.s32.totalorder %s20, 0
      %p118 = por %p116, %p117
      %p119 = scmp.ne.s32.totalorder %s107, %s108
      %p120 = scmp.eq.s32.totalorder %s21, 1
      %p121 = por %p119, %p120
      %p123 = scmp.ne.s32.totalorder %s108, %s122
      %p124 = scmp.eq.s32.totalorder %s21, 0
      %p125 = por %p123, %p124
      %s127 = sadd.s32 %s126, 1
      %p130 = scmp.eq.s32.totalorder %s15, 1
      %p131 = scmp.ne.s32.totalorder %s126, %s128
      %p132 = scmp.eq.s32.totalorder %s15, 0
      %p133 = por %p131, %p132
      %p134 = scmp.ne.s32.totalorder %s126, %s128
      %p135 = scmp.eq.s32.totalorder %s20, 1
      %p136 = por %p134, %p135
      %p137 = scmp.ne.s32.totalorder %s128, %s129
      %p138 = scmp.eq.s32.totalorder %s20, 0
      %p139 = por %p137, %p138
      %p140 = scmp.ne.s32.totalorder %s128, %s129
      %p141 = scmp.eq.s32.totalorder %s21, 1
      %p142 = por %p140, %p141
      %p144 = scmp.ne.s32.totalorder %s129, %s143
      %p145 = scmp.eq.s32.totalorder %s21, 0
      %p146 = por %p144, %p145
      %s147 = ssub.s32 %s22, %s34
      %s148 = ssub.s32 %s23, %s30
      %s149 = sor.u32 %s147, %s148
      %p150 = scmp.eq.s32.totalorder %s149, 0
      %s152 = sadd.s32 %s151, 1
      %s153 = scalar_select %p150, %s151, %s152
      %p156 = pneg %p150
      %p157 = scmp.eq.s32.totalorder %s15, 1
      %p158 = por %p156, %p157
      %p159 = scmp.ne.s32.totalorder %s151, %s154
      %p160 = scmp.eq.s32.totalorder %s15, 0
      %p161 = por %p159, %p160
      %p162 = scmp.ne.s32.totalorder %s151, %s154
      %p163 = scmp.eq.s32.totalorder %s20, 1
      %p164 = por %p162, %p163
      %p165 = scmp.ne.s32.totalorder %s154, %s155
      %p166 = scmp.eq.s32.totalorder %s20, 0
      %p167 = por %p165, %p166
      %p168 = scmp.ne.s32.totalorder %s154, %s155
      %p169 = scmp.eq.s32.totalorder %s21, 1
      %p170 = por %p168, %p169
      %p172 = scmp.ne.s32.totalorder %s155, %s171
      %p173 = scmp.eq.s32.totalorder %s21, 0
      %p174 = por %p172, %p173
      %p175 = scmp.le.s32.totalorder 1, %s15
      %p176 = scmp.lt.s32.totalorder %s15, 3
      %p177 = pnand %p175, %p176
      %p178 = pneg %p177
      // Predicated region
      $region9: #{tpu_custom_call.1} parent=5 // pred_check
        _
      $region10: #{tpu_custom_call.1} parent=5 // pred_check_branch
        %180 = sbr.rel (%p177) target = $region12
      $region11: #{tpu_custom_call.1} parent=5 // pred_region
        %s181 = ssub.s32 %s15, 1
        // Predicated region
        $region13: #{tpu_custom_call.1} parent=11 // pred_check
          %p182 = pneg %p76
        $region14: #{tpu_custom_call.1} parent=11 // pred_check_branch
          %184 = sbr.rel (%p182) target = $region16
        $region15: #{tpu_custom_call.1} parent=11 // pred_region
          %s186 = ssub.s32 3072, 3072
          %187 = vsyncadd [#allocation5], %s186
          %s188 = sshll.u32 [#allocation4], 4
          %s189 = int_to_ptr.vmem [resolvable:$true] %s188
          %194 = dma.hbm_to_vmem [thread:$0]  %s1, 3072, %s189, [#allocation5], 64, 64, 4
        $region16: #{tpu_custom_call.1} parent=11 // pred_fallthru
          _
        // Predicated region
        $region17: #{tpu_custom_call.1} parent=11 // pred_check
          %p195 = pneg %p97
        $region18: #{tpu_custom_call.1} parent=11 // pred_check_branch
          %197 = sbr.rel (%p195) target = $region20
        $region19: #{tpu_custom_call.1} parent=11 // pred_region
          _
        $region20: #{tpu_custom_call.1} parent=11 // pred_fallthru
          _
        // Predicated region
        $region21: #{tpu_custom_call.1} parent=11 // pred_check
          %p198 = pneg %p118
        $region22: #{tpu_custom_call.1} parent=11 // pred_check_branch
          %200 = sbr.rel (%p198) target = $region24
        $region23: #{tpu_custom_call.1} parent=11 // pred_region
          _
        $region24: #{tpu_custom_call.1} parent=11 // pred_fallthru
          _
        // Predicated region
        $region25: #{tpu_custom_call.1} parent=11 // pred_check
          %p201 = pneg %p139
        $region26: #{tpu_custom_call.1} parent=11 // pred_check_branch
          %203 = sbr.rel (%p201) target = $region28
        $region27: #{tpu_custom_call.1} parent=11 // pred_region
          _
        $region28: #{tpu_custom_call.1} parent=11 // pred_fallthru
          _
      $region12: #{tpu_custom_call.1} parent=5 // pred_fallthru
        _
      %p204 = scmp.lt.s32.totalorder %s15, 2
      // Predicated region
      $region29: #{tpu_custom_call.1} parent=5 // pred_check
        %p205 = pneg %p204
      $region30: #{tpu_custom_call.1} parent=5 // pred_check_branch
        %207 = sbr.rel (%p205) target = $region32
      $region31: #{tpu_custom_call.1} parent=5 // pred_region
        // Predicated region
        $region33: #{tpu_custom_call.1} parent=31 // pred_check
          %p208 = pneg %p49
        $region34: #{tpu_custom_call.1} parent=31 // pred_check_branch
          %210 = sbr.rel (%p208) target = $region36
        $region35: #{tpu_custom_call.1} parent=31 // pred_region
          %s211 = sand.u32 %s39, 1
          %s212 = scalar_lea.sflag [#allocation3], %s211
          %s213 = sand.u32 %s39, 1
          %s214 = smul.addr %s213, 300
          %s215 = scalar_lea.vmem [#allocation2], %s214
          %s216 = smul.u32 25, %s23
          %s218 = ssub.s32 4800, 4800
          %219 = vsyncadd %s212, %s218
          %s220 = smul.addr %s216, 3
          %s221 = smul.addr %s22, 75
          %s222 = sadd.s32 %s220, %s221
          %s223 = smul.addr %s222, 64
          %s224 = scalar_lea.hbm %s0, %s223
          %s225 = sshll.u32 %s215, 4
          %s226 = int_to_ptr.vmem [resolvable:$true] %s225
          %231 = dma.hbm_to_vmem [thread:$0]  %s224, 4800, %s226, %s212, 192, 192, 12
        $region36: #{tpu_custom_call.1} parent=31 // pred_fallthru
          _
      $region32: #{tpu_custom_call.1} parent=5 // pred_fallthru
        _
      %p232 = scmp.le.s32.totalorder 1, %s15
      %p233 = scmp.lt.s32.totalorder %s15, 3
      %p234 = pnand %p232, %p233
      %p235 = pneg %p234
      // Predicated region
      $region37: #{tpu_custom_call.1} parent=5 // pred_check
        _
      $region38: #{tpu_custom_call.1} parent=5 // pred_check_branch
        %237 = sbr.rel (%p234) target = $region40
      $region39: #{tpu_custom_call.1} parent=5 // pred_region
        %s238 = ssub.s32 %s15, 1
        %s239 = sand.u32 %s42, 1
        %s240 = scalar_lea.sflag [#allocation3], %s239
        %s241 = sand.u32 %s42, 1
        %s242 = smul.addr %s241, 300
        %s243 = scalar_lea.vmem [#allocation2], %s242
        // Predicated region
        $region41: #{tpu_custom_call.1} parent=39 // pred_check
          %p244 = pneg %p55
        $region42: #{tpu_custom_call.1} parent=39 // pred_check_branch
          %246 = sbr.rel (%p244) target = $region44
        $region43: #{tpu_custom_call.1} parent=39 // pred_region
          %247 = dma.done %s240, 4800
        $region44: #{tpu_custom_call.1} parent=39 // pred_fallthru
          _
        // Predicated region
        $region45: #{tpu_custom_call.1} parent=39 // pred_check
          %p248 = pneg %p76
        $region46: #{tpu_custom_call.1} parent=39 // pred_check_branch
          %250 = sbr.rel (%p248) target = $region48
        $region47: #{tpu_custom_call.1} parent=39 // pred_region
          %251 = dma.done [#allocation5], 3072
        $region48: #{tpu_custom_call.1} parent=39 // pred_fallthru
          _
        %s252 = sand.u32 %s42, 1
        %s253 = scalar_lea.sflag [#allocation3], %s252
        %s254 = sand.u32 %s42, 1
        %s255 = smul.addr %s254, 300
        %s256 = scalar_lea.vmem [#allocation2], %s255
        %p257 = pneg %p55
        %p258 = pneg %p52
        %p259 = pneg %p76
        %p260 = pneg %p73
        %p261 = pneg %p97
        %p262 = pneg %p94
        %p263 = pneg %p118
        %p264 = pneg %p115
        %p265 = pneg %p139
        %p266 = pneg %p136
        %p267 = pneg %p167
        %p268 = pneg %p164
        %s269 = smul.u32 2, %s25
        %p270 = scmp.lt.s32.totalorder %s24, 1
        %s271 = scalar_select %p270, %s24, 1
        %p272 = scmp.lt.s32.totalorder %s269, 1
        %s273 = scalar_select %p272, %s269, 1
        %s274 = smul.addr %s271, 6
        %s275 = sadd.s32 %s273, %s274
        %s276 = smul.addr %s275, 8
        %s277 = scalar_lea.vmem %s5, %s276
        %s278 = smul.u32 25, %s25
        %s279 = smul.u32 2, %s25
        %p280 = scmp.lt.s32.totalorder %s24, 1
        %s281 = scalar_select %p280, %s24, 1
        %p282 = scmp.lt.s32.totalorder %s279, 1
        %s283 = scalar_select %p282, %s279, 1
        %s284 = smul.addr %s281, 6
        %s285 = sadd.s32 %s283, %s284
        %s286 = smul.addr %s285, 8
        %s287 = scalar_lea.vmem %s5, %s286
        %s288 = smul.u32 2, %s25
        %v290 = vld [vmem:[#allocation4] sm:$0xf]
        %v291 = vld [vmem:[#allocation4 + $0x4] sm:$0xf]
        %v292 = vld [vmem:[#allocation4 + $0x8] sm:$0xf]
        %v293 = vld [vmem:[#allocation4 + $0xc] sm:$0xf]
        %v294 = vld [vmem:[#allocation4 + $0x10] sm:$0xf]
        %v295 = vld [vmem:[#allocation4 + $0x14] sm:$0xf]
        %v296 = vld [vmem:[#allocation4 + $0x18] sm:$0xf]
        %v297 = vld [vmem:[#allocation4 + $0x1c] sm:$0xf]
        %v298 = vld [vmem:[#allocation4 + $0x20] sm:$0xf]
        %v299 = vld [vmem:[#allocation4 + $0x24] sm:$0xf]
        %v300 = vld [vmem:[#allocation4 + $0x28] sm:$0xf]
        %v301 = vld [vmem:[#allocation4 + $0x2c] sm:$0xf]
        %v302 = vld [vmem:[#allocation4 + $0x30] sm:$0xf]
        %v303 = vld [vmem:[#allocation4 + $0x34] sm:$0xf]
        %v304 = vld [vmem:[#allocation4 + $0x38] sm:$0xf]
        %v305 = vld [vmem:[#allocation4 + $0x3c] sm:$0xf]
        %v306 = vld [vmem:[#allocation4 + $0x40] sm:$0xf]
        %v307 = vld [vmem:[#allocation4 + $0x44] sm:$0xf]
        %v308 = vld [vmem:[#allocation4 + $0x48] sm:$0xf]
        %v309 = vld [vmem:[#allocation4 + $0x4c] sm:$0xf]
        %v310 = vld [vmem:[#allocation4 + $0x50] sm:$0xf]
        %v311 = vld [vmem:[#allocation4 + $0x54] sm:$0xf]
        %v312 = vld [vmem:[#allocation4 + $0x58] sm:$0xf]
        %v313 = vld [vmem:[#allocation4 + $0x5c] sm:$0xf]
        %v314 = vld [vmem:[#allocation4 + $0x60] sm:$0xf]
        %v315 = vld [vmem:[#allocation4 + $0x64] sm:$0xf]
        %v316 = vld [vmem:[#allocation4 + $0x68] sm:$0xf]
        %v317 = vld [vmem:[#allocation4 + $0x6c] sm:$0xf]
        %v318 = vld [vmem:[#allocation4 + $0x70] sm:$0xf]
        %v319 = vld [vmem:[#allocation4 + $0x74] sm:$0xf]
        %v320 = vld [vmem:[#allocation4 + $0x78] sm:$0xf]
        %v321 = vld [vmem:[#allocation4 + $0x7c] sm:$0xf]
        %v322 = vld [vmem:[#allocation4 + $0x80] sm:$0xf]
        %v323 = vld [vmem:[#allocation4 + $0x84] sm:$0xf]
        %v324 = vld [vmem:[#allocation4 + $0x88] sm:$0xf]
        %v325 = vld [vmem:[#allocation4 + $0x8c] sm:$0xf]
        %v326 = vld [vmem:[#allocation4 + $0x90] sm:$0xf]
        %v327 = vld [vmem:[#allocation4 + $0x94] sm:$0xf]
        %v328 = vld [vmem:[#allocation4 + $0x98] sm:$0xf]
        %v329 = vld [vmem:[#allocation4 + $0x9c] sm:$0xf]
        %v330 = vld [vmem:[#allocation4 + $0xa0] sm:$0xf]
        %v331 = vld [vmem:[#allocation4 + $0xa4] sm:$0xf]
        %v332 = vld [vmem:[#allocation4 + $0xa8] sm:$0xf]
        %v333 = vld [vmem:[#allocation4 + $0xac] sm:$0xf]
        %v334 = vld [vmem:[#allocation4 + $0xb0] sm:$0xf]
        %v335 = vld [vmem:[#allocation4 + $0xb4] sm:$0xf]
        %v336 = vld [vmem:[#allocation4 + $0xb8] sm:$0xf]
        %v337 = vld [vmem:[#allocation4 + $0xbc] sm:$0xf]
        %v338 = vld [vmem:[%s2] sm:$0x1]
        %v339 = vld [vmem:[%s3] sm:$0xf]
        %v340 = vld [vmem:[%s3 + $0x4] sm:$0xf]
        %v341 = vld [vmem:[%s3 + $0x8] sm:$0xf]
        %v342 = vld [vmem:[%s4] sm:$0xff]
        %v343 = vld [vmem:[%s4 + $0x8] sm:$0xff]
        %v344 = vld [vmem:[%s4 + $0x10] sm:$0x7f]
        %v345 = vld [vmem:[%s243] sm:$0xff]
        %v346 = vld [vmem:[%s243 + $0x8] sm:$0xf]
        %v347 = vld [vmem:[%s243 + $0xc] sm:$0xff]
        %v348 = vld [vmem:[%s243 + $0x14] sm:$0xf]
        %v349 = vld [vmem:[%s243 + $0x18] sm:$0xff]
        %v350 = vld [vmem:[%s243 + $0x20] sm:$0xf]
        %v351 = vld [vmem:[%s243 + $0x24] sm:$0xff]
        %v352 = vld [vmem:[%s243 + $0x2c] sm:$0xf]
        %v353 = vld [vmem:[%s243 + $0x30] sm:$0xff]
        %v354 = vld [vmem:[%s243 + $0x38] sm:$0xf]
        %v355 = vld [vmem:[%s243 + $0x3c] sm:$0xff]
        %v356 = vld [vmem:[%s243 + $0x44] sm:$0xf]
        %v357 = vld [vmem:[%s243 + $0x48] sm:$0xff]
        %v358 = vld [vmem:[%s243 + $0x50] sm:$0xf]
        %v359 = vld [vmem:[%s243 + $0x54] sm:$0xff]
        %v360 = vld [vmem:[%s243 + $0x5c] sm:$0xf]
        %v361 = vld [vmem:[%s243 + $0x60] sm:$0xff]
        %v362 = vld [vmem:[%s243 + $0x68] sm:$0xf]
        %v363 = vld [vmem:[%s243 + $0x6c] sm:$0xff]
        %v364 = vld [vmem:[%s243 + $0x74] sm:$0xf]
        %v365 = vld [vmem:[%s243 + $0x78] sm:$0xff]
        %v366 = vld [vmem:[%s243 + $0x80] sm:$0xf]
        %v367 = vld [vmem:[%s243 + $0x84] sm:$0xff]
        %v368 = vld [vmem:[%s243 + $0x8c] sm:$0xf]
        %v369 = vld [vmem:[%s243 + $0x90] sm:$0xff]
        %v370 = vld [vmem:[%s243 + $0x98] sm:$0xf]
        %v371 = vld [vmem:[%s243 + $0x9c] sm:$0xff]
        %v372 = vld [vmem:[%s243 + $0xa4] sm:$0xf]
        %v373 = vld [vmem:[%s243 + $0xa8] sm:$0xff]
        %v374 = vld [vmem:[%s243 + $0xb0] sm:$0xf]
        %v375 = vld [vmem:[%s243 + $0xb4] sm:$0xff]
        %v376 = vld [vmem:[%s243 + $0xbc] sm:$0xf]
        %v377 = vld [vmem:[%s243 + $0xc0] sm:$0xff]
        %v378 = vld [vmem:[%s243 + $0xc8] sm:$0xf]
        %v379 = vld [vmem:[%s243 + $0xcc] sm:$0xff]
        %v380 = vld [vmem:[%s243 + $0xd4] sm:$0xf]
        %v381 = vld [vmem:[%s243 + $0xd8] sm:$0xff]
        %v382 = vld [vmem:[%s243 + $0xe0] sm:$0xf]
        %v383 = vld [vmem:[%s243 + $0xe4] sm:$0xff]
        %v384 = vld [vmem:[%s243 + $0xec] sm:$0xf]
        %v385 = vld [vmem:[%s243 + $0xf0] sm:$0xff]
        %v386 = vld [vmem:[%s243 + $0xf8] sm:$0xf]
        %v387 = vld [vmem:[%s243 + $0xfc] sm:$0xff]
        %v388 = vld [vmem:[%s243 + $0x104] sm:$0xf]
        %v389 = vld [vmem:[%s243 + $0x108] sm:$0xff]
        %v390 = vld [vmem:[%s243 + $0x110] sm:$0xf]
        %v391 = vld [vmem:[%s243 + $0x114] sm:$0xff]
        %v392 = vld [vmem:[%s243 + $0x11c] sm:$0xf]
        %v393 = vld [vmem:[%s243 + $0x120] sm:$0xff]
        %v394 = vld [vmem:[%s243 + $0x128] sm:$0xf]
        %v396 = vlaneseq
        %v397 = vshrl.u32 %v396, 7
        %v398 = vsub.s32 0, %v397
        %v399 = vrot.slane %v338, %v398
        %v451 = vunpack.c.l.b16 %v345
        %v452 = vunpack.c.h.b16 %v345
        %v453 = vunpack.c.l.b16 %v346
        %v454 = vunpack.c.l.b16 %v347
        %v455 = vunpack.c.h.b16 %v347
        %v456 = vunpack.c.l.b16 %v348
        %v457 = vunpack.c.l.b16 %v349
        %v458 = vunpack.c.h.b16 %v349
        %v459 = vunpack.c.l.b16 %v350
        %v460 = vunpack.c.l.b16 %v351
        %v461 = vunpack.c.h.b16 %v351
        %v462 = vunpack.c.l.b16 %v352
        %v463 = vunpack.c.l.b16 %v353
        %v464 = vunpack.c.h.b16 %v353
        %v465 = vunpack.c.l.b16 %v354
        %v466 = vunpack.c.l.b16 %v355
        %v467 = vunpack.c.h.b16 %v355
        %v468 = vunpack.c.l.b16 %v356
        %v469 = vunpack.c.l.b16 %v357
        %v470 = vunpack.c.h.b16 %v357
        %v471 = vunpack.c.l.b16 %v358
        %v472 = vunpack.c.l.b16 %v359
        %v473 = vunpack.c.h.b16 %v359
        %v474 = vunpack.c.l.b16 %v360
        %v475 = vunpack.c.l.b16 %v361
        %v476 = vunpack.c.h.b16 %v361
        %v477 = vunpack.c.l.b16 %v362
        %v478 = vunpack.c.l.b16 %v363
        %v479 = vunpack.c.h.b16 %v363
        %v480 = vunpack.c.l.b16 %v364
        %v481 = vunpack.c.l.b16 %v365
        %v482 = vunpack.c.h.b16 %v365
        %v483 = vunpack.c.l.b16 %v366
        %v484 = vunpack.c.l.b16 %v367
        %v485 = vunpack.c.h.b16 %v367
        %v486 = vunpack.c.l.b16 %v368
        %v487 = vunpack.c.l.b16 %v369
        %v488 = vunpack.c.h.b16 %v369
        %v489 = vunpack.c.l.b16 %v370
        %v490 = vunpack.c.l.b16 %v371
        %v491 = vunpack.c.h.b16 %v371
        %v492 = vunpack.c.l.b16 %v372
        %v493 = vunpack.c.l.b16 %v373
        %v494 = vunpack.c.h.b16 %v373
        %v495 = vunpack.c.l.b16 %v374
        %v496 = vunpack.c.l.b16 %v375
        %v497 = vunpack.c.h.b16 %v375
        %v498 = vunpack.c.l.b16 %v376
        %v499 = vunpack.c.l.b16 %v377
        %v500 = vunpack.c.h.b16 %v377
        %v501 = vunpack.c.l.b16 %v378
        %v502 = vunpack.c.l.b16 %v379
        %v503 = vunpack.c.h.b16 %v379
        %v504 = vunpack.c.l.b16 %v380
        %v505 = vunpack.c.l.b16 %v381
        %v506 = vunpack.c.h.b16 %v381
        %v507 = vunpack.c.l.b16 %v382
        %v508 = vunpack.c.l.b16 %v383
        %v509 = vunpack.c.h.b16 %v383
        %v510 = vunpack.c.l.b16 %v384
        %v511 = vunpack.c.l.b16 %v385
        %v512 = vunpack.c.h.b16 %v385
        %v513 = vunpack.c.l.b16 %v386
        %v514 = vunpack.c.l.b16 %v387
        %v515 = vunpack.c.h.b16 %v387
        %v516 = vunpack.c.l.b16 %v388
        %v517 = vunpack.c.l.b16 %v389
        %v518 = vunpack.c.h.b16 %v389
        %v519 = vunpack.c.l.b16 %v390
        %v520 = vunpack.c.l.b16 %v391
        %v521 = vunpack.c.h.b16 %v391
        %v522 = vunpack.c.l.b16 %v392
        %v523 = vunpack.c.l.b16 %v393
        %v524 = vunpack.c.h.b16 %v393
        %v525 = vunpack.c.l.b16 %v394
        %v526 = vpack.c.b16 %v454, %v451
        %v527 = vpack.c.b16 %v455, %v452
        %v528 = vpack.c.b16 %v456, %v453
        %v529 = vpack.c.b16 %v460, %v457
        %v530 = vpack.c.b16 %v461, %v458
        %v531 = vpack.c.b16 %v462, %v459
        %v532 = vpack.c.b16 %v466, %v463
        %v533 = vpack.c.b16 %v467, %v464
        %v534 = vpack.c.b16 %v468, %v465
        %v535 = vpack.c.b16 %v472, %v469
        %v536 = vpack.c.b16 %v473, %v470
        %v537 = vpack.c.b16 %v474, %v471
        %v538 = vpack.c.b16 %v478, %v475
        %v539 = vpack.c.b16 %v479, %v476
        %v540 = vpack.c.b16 %v480, %v477
        %v541 = vpack.c.b16 %v484, %v481
        %v542 = vpack.c.b16 %v485, %v482
        %v543 = vpack.c.b16 %v486, %v483
        %v544 = vpack.c.b16 %v490, %v487
        %v545 = vpack.c.b16 %v491, %v488
        %v546 = vpack.c.b16 %v492, %v489
        %v547 = vpack.c.b16 %v496, %v493
        %v548 = vpack.c.b16 %v497, %v494
        %v549 = vpack.c.b16 %v498, %v495
        %v550 = vpack.c.b16 %v502, %v499
        %v551 = vpack.c.b16 %v503, %v500
        %v552 = vpack.c.b16 %v504, %v501
        %v553 = vpack.c.b16 %v508, %v505
        %v554 = vpack.c.b16 %v509, %v506
        %v555 = vpack.c.b16 %v510, %v507
        %v556 = vpack.c.b16 %v514, %v511
        %v557 = vpack.c.b16 %v515, %v512
        %v558 = vpack.c.b16 %v516, %v513
        %v559 = vpack.c.b16 %v520, %v517
        %v560 = vpack.c.b16 %v521, %v518
        %v561 = vpack.c.b16 %v522, %v519
        %v562 = vpack.c.b16 %v523, %v523
        %v563 = vpack.c.b16 %v524, %v524
        %v564 = vpack.c.b16 %v525, %v525
        %v652 = vunpack.c.l.b16 %v290
        %v653 = vunpack.c.l.b16 %v291
        %v654 = vunpack.c.l.b16 %v292
        %v655 = vunpack.c.l.b16 %v293
        %v656 = vunpack.c.l.b16 %v294
        %v657 = vunpack.c.l.b16 %v295
        %v658 = vunpack.c.l.b16 %v296
        %v659 = vunpack.c.l.b16 %v297
        %v660 = vunpack.c.l.b16 %v298
        %v661 = vunpack.c.l.b16 %v299
        %v662 = vunpack.c.l.b16 %v300
        %v663 = vunpack.c.l.b16 %v301
        %v664 = vunpack.c.l.b16 %v302
        %v665 = vunpack.c.l.b16 %v303
        %v666 = vunpack.c.l.b16 %v304
        %v667 = vunpack.c.l.b16 %v305
        %v668 = vunpack.c.l.b16 %v306
        %v669 = vunpack.c.l.b16 %v307
        %v670 = vunpack.c.l.b16 %v308
        %v671 = vunpack.c.l.b16 %v309
        %v672 = vunpack.c.l.b16 %v310
        %v673 = vunpack.c.l.b16 %v311
        %v674 = vunpack.c.l.b16 %v312
        %v675 = vunpack.c.l.b16 %v313
        %v676 = vunpack.c.l.b16 %v314
        %v677 = vunpack.c.l.b16 %v315
        %v678 = vunpack.c.l.b16 %v316
        %v679 = vunpack.c.l.b16 %v317
        %v680 = vunpack.c.l.b16 %v318
        %v681 = vunpack.c.l.b16 %v319
        %v682 = vunpack.c.l.b16 %v320
        %v683 = vunpack.c.l.b16 %v321
        %v684 = vunpack.c.l.b16 %v322
        %v685 = vunpack.c.l.b16 %v323
        %v686 = vunpack.c.l.b16 %v324
        %v687 = vunpack.c.l.b16 %v325
        %v688 = vunpack.c.l.b16 %v326
        %v689 = vunpack.c.l.b16 %v327
        %v690 = vunpack.c.l.b16 %v328
        %v691 = vunpack.c.l.b16 %v329
        %v692 = vunpack.c.l.b16 %v330
        %v693 = vunpack.c.l.b16 %v331
        %v694 = vunpack.c.l.b16 %v332
        %v695 = vunpack.c.l.b16 %v333
        %v696 = vunpack.c.l.b16 %v334
        %v697 = vunpack.c.l.b16 %v335
        %v698 = vunpack.c.l.b16 %v336
        %v699 = vunpack.c.l.b16 %v337
        %v700 = vpack.c.b16 %v653, %v652
        %v701 = vpack.c.b16 %v655, %v654
        %v702 = vpack.c.b16 %v657, %v656
        %v703 = vpack.c.b16 %v659, %v658
        %v704 = vpack.c.b16 %v661, %v660
        %v705 = vpack.c.b16 %v663, %v662
        %v706 = vpack.c.b16 %v665, %v664
        %v707 = vpack.c.b16 %v667, %v666
        %v708 = vpack.c.b16 %v669, %v668
        %v709 = vpack.c.b16 %v671, %v670
        %v710 = vpack.c.b16 %v673, %v672
        %v711 = vpack.c.b16 %v675, %v674
        %v712 = vpack.c.b16 %v677, %v676
        %v713 = vpack.c.b16 %v679, %v678
        %v714 = vpack.c.b16 %v681, %v680
        %v715 = vpack.c.b16 %v683, %v682
        %v716 = vpack.c.b16 %v685, %v684
        %v717 = vpack.c.b16 %v687, %v686
        %v718 = vpack.c.b16 %v689, %v688
        %v719 = vpack.c.b16 %v691, %v690
        %v720 = vpack.c.b16 %v693, %v692
        %v721 = vpack.c.b16 %v695, %v694
        %v722 = vpack.c.b16 %v697, %v696
        %v723 = vpack.c.b16 %v699, %v698
        %748 = vmatprep.subr.bf16.mxu0 0
        %749 = vmatpush1.bf16.msra.mxu0 %v700
        %750 = vmatprep.subr.bf16.mxu0 0
        %751 = vmatpush1.bf16.msra.mxu0 %v701
        %752 = vmatprep.subr.bf16.mxu0 0
        %753 = vmatpush1.bf16.msra.mxu0 %v702
        %754 = vmatprep.subr.bf16.mxu0 0
        %755 = vmatpush1.bf16.msra.mxu0 %v703
        %756 = vmatprep.subr.bf16.mxu0 0
        %757 = vmatpush1.bf16.msra.mxu0 %v704
        %758 = vmatprep.subr.bf16.mxu0 0
        %759 = vmatpush1.bf16.msra.mxu0 %v705
        %760 = vmatprep.subr.bf16.mxu0 0
        %761 = vmatpush1.bf16.msra.mxu0 %v706
        %762 = vmatprep.subr.bf16.mxu0 0
        %763 = vmatpush1.bf16.msra.mxu0 %v707
        %764 = vmatprep.subr.bf16.mxu0 0
        %765 = vmatpush1.bf16.msra.mxu0 %v708
        %766 = vmatprep.subr.bf16.mxu0 0
        %767 = vmatpush1.bf16.msra.mxu0 %v709
        %768 = vmatprep.subr.bf16.mxu0 0
        %769 = vmatpush1.bf16.msra.mxu0 %v710
        %770 = vmatprep.subr.bf16.mxu0 0
        %771 = vmatpush1.bf16.msra.mxu0 %v711
        %772 = vmatprep.subr.bf16.mxu0 0
        %773 = vmatpush1.bf16.msra.mxu0 %v712
        %774 = vmatprep.subr.bf16.mxu0 0
        %775 = vmatpush1.bf16.msra.mxu0 %v713
        %776 = vmatprep.subr.bf16.mxu0 0
        %777 = vmatpush1.bf16.msra.mxu0 %v714
        %778 = vmatprep.subr.bf16.mxu0 0
        %779 = vmatpush1.bf16.msra.mxu0 %v715
        %780 = vmatprep.mubr.bf16.mxu0 %v527
        %781 = vmatmul.mubr.bf16.gmra.mrb[0].mxu0 %v526
        %v782 = vpop.f32.mrb[0].mxu0
        %v783 = vadd.f32 %v399, %v782
        %v784 = vpop.f32.mrb[0].mxu0
        %v785 = vpop.f32.mrb[0].mxu0
        %v786 = vadd.f32 %v399, %v785
        %v787 = vpop.f32.mrb[0].mxu0
        %788 = vmatprep.mubr.bf16.mxu0 %v530
        %789 = vmatmul.mubr.bf16.gmra.mrb[0].mxu0 %v529
        %v790 = vpop.f32.mrb[0].mxu0
        %v791 = vadd.f32 %v399, %v790
        %v792 = vpop.f32.mrb[0].mxu0
        %v793 = vpop.f32.mrb[0].mxu0
        %v794 = vadd.f32 %v399, %v793
        %v795 = vpop.f32.mrb[0].mxu0
        %796 = vmatprep.mubr.bf16.mxu0 %v533
        %797 = vmatmul.mubr.bf16.gmra.mrb[0].mxu0 %v532
        %v798 = vpop.f32.mrb[0].mxu0
        %v799 = vadd.f32 %v399, %v798
        %v800 = vpop.f32.mrb[0].mxu0
        %v801 = vpop.f32.mrb[0].mxu0
        %v802 = vadd.f32 %v399, %v801
        %v803 = vpop.f32.mrb[0].mxu0
        %804 = vmatprep.mubr.bf16.mxu0 %v536
        %805 = vmatmul.mubr.bf16.gmra.mrb[0].mxu0 %v535
        %v806 = vpop.f32.mrb[0].mxu0
        %v807 = vadd.f32 %v399, %v806
        %v808 = vpop.f32.mrb[0].mxu0
        %v809 = vpop.f32.mrb[0].mxu0
        %v810 = vadd.f32 %v399, %v809
        %v811 = vpop.f32.mrb[0].mxu0
        %812 = vmatprep.mubr.bf16.mxu0 %v539
        %813 = vmatmul.mubr.bf16.gmra.mrb[0].mxu0 %v538
        %v814 = vpop.f32.mrb[0].mxu0
        %v815 = vadd.f32 %v399, %v814
        %v816 = vpop.f32.mrb[0].mxu0
        %v817 = vpop.f32.mrb[0].mxu0
        %v818 = vadd.f32 %v399, %v817
        %v819 = vpop.f32.mrb[0].mxu0
        %820 = vmatprep.mubr.bf16.mxu0 %v542
        %821 = vmatmul.mubr.bf16.gmra.mrb[0].mxu0 %v541
        %v822 = vpop.f32.mrb[0].mxu0
        %v823 = vadd.f32 %v399, %v822
        %v824 = vpop.f32.mrb[0].mxu0
        %v825 = vpop.f32.mrb[0].mxu0
        %v826 = vadd.f32 %v399, %v825
        %v827 = vpop.f32.mrb[0].mxu0
        %828 = vmatprep.mubr.bf16.mxu0 %v545
        %829 = vmatmul.mubr.bf16.gmra.mrb[0].mxu0 %v544
        %v830 = vpop.f32.mrb[0].mxu0
        %v831 = vadd.f32 %v399, %v830
        %v832 = vpop.f32.mrb[0].mxu0
        %v833 = vpop.f32.mrb[0].mxu0
        %v834 = vadd.f32 %v399, %v833
        %v835 = vpop.f32.mrb[0].mxu0
        %836 = vmatprep.mubr.bf16.mxu0 %v548
        %837 = vmatmul.mubr.bf16.gmra.mrb[0].mxu0 %v547
        %v838 = vpop.f32.mrb[0].mxu0
        %v839 = vadd.f32 %v399, %v838
        %v840 = vpop.f32.mrb[0].mxu0
        %v841 = vpop.f32.mrb[0].mxu0
        %v842 = vadd.f32 %v399, %v841
        %v843 = vpop.f32.mrb[0].mxu0
        %844 = vmatprep.mubr.bf16.mxu0 %v551
        %845 = vmatmul.mubr.bf16.gmra.mrb[0].mxu0 %v550
        %v846 = vpop.f32.mrb[0].mxu0
        %v847 = vadd.f32 %v399, %v846
        %v848 = vpop.f32.mrb[0].mxu0
        %v849 = vpop.f32.mrb[0].mxu0
        %v850 = vadd.f32 %v399, %v849
        %v851 = vpop.f32.mrb[0].mxu0
        %852 = vmatprep.mubr.bf16.mxu0 %v554
        %853 = vmatmul.mubr.bf16.gmra.mrb[0].mxu0 %v553
        %v854 = vpop.f32.mrb[0].mxu0
        %v855 = vadd.f32 %v399, %v854
        %v856 = vpop.f32.mrb[0].mxu0
        %v857 = vpop.f32.mrb[0].mxu0
        %v858 = vadd.f32 %v399, %v857
        %v859 = vpop.f32.mrb[0].mxu0
        %860 = vmatprep.mubr.bf16.mxu0 %v557
        %861 = vmatmul.mubr.bf16.gmra.mrb[0].mxu0 %v556
        %v862 = vpop.f32.mrb[0].mxu0
        %v863 = vadd.f32 %v399, %v862
        %v864 = vpop.f32.mrb[0].mxu0
        %v865 = vpop.f32.mrb[0].mxu0
        %v866 = vadd.f32 %v399, %v865
        %v867 = vpop.f32.mrb[0].mxu0
        %868 = vmatprep.mubr.bf16.mxu0 %v560
        %869 = vmatmul.mubr.bf16.gmra.mrb[0].mxu0 %v559
        %v870 = vpop.f32.mrb[0].mxu0
        %v871 = vadd.f32 %v399, %v870
        %v872 = vpop.f32.mrb[0].mxu0
        %v873 = vpop.f32.mrb[0].mxu0
        %v874 = vadd.f32 %v399, %v873
        %v875 = vpop.f32.mrb[0].mxu0
        %876 = vmatprep.mubr.bf16.mxu0 %v563
        %877 = vmatmul.mubr.bf16.gmra.mrb[0].mxu0 %v562
        %v878 = vpop.f32.mrb[0].mxu0
        %v879 = vadd.f32 %v399, %v878
        %v880 = vpop.f32.mrb[0].mxu0
        %v881 = vpop.f32.mrb[0].mxu0
        %v882 = vpop.f32.mrb[0].mxu0
        %883 = vdwg.mxu0
        %884 = vmatprep.subr.bf16.mxu0 0
        %885 = vmatpush1.bf16.msra.mxu0 %v716
        %886 = vmatprep.subr.bf16.mxu0 0
        %887 = vmatpush1.bf16.msra.mxu0 %v717
        %888 = vmatprep.subr.bf16.mxu0 0
        %889 = vmatpush1.bf16.msra.mxu0 %v718
        %890 = vmatprep.subr.bf16.mxu0 0
        %891 = vmatpush1.bf16.msra.mxu0 %v719
        %892 = vmatprep.subr.bf16.mxu0 0
        %893 = vmatpush1.bf16.msra.mxu0 %v720
        %894 = vmatprep.subr.bf16.mxu0 0
        %895 = vmatpush1.bf16.msra.mxu0 %v721
        %896 = vmatprep.subr.bf16.mxu0 0
        %897 = vmatpush1.bf16.msra.mxu0 %v722
        %898 = vmatprep.subr.bf16.mxu0 0
        %899 = vmatpush1.bf16.msra.mxu0 %v723
        %900 = vmatprep.subr.bf16.mxu0 0
        %901 = vmatpush1.bf16.msra.mxu0 0
        %902 = vmatprep.subr.bf16.mxu0 0
        %903 = vmatpush1.bf16.msra.mxu0 0
        %904 = vmatprep.subr.bf16.mxu0 0
        %905 = vmatpush1.bf16.msra.mxu0 0
        %906 = vmatprep.subr.bf16.mxu0 0
        %907 = vmatpush1.bf16.msra.mxu0 0
        %908 = vmatprep.subr.bf16.mxu0 0
        %909 = vmatpush1.bf16.msra.mxu0 0
        %910 = vmatprep.subr.bf16.mxu0 0
        %911 = vmatpush1.bf16.msra.mxu0 0
        %912 = vmatprep.subr.bf16.mxu0 0
        %913 = vmatpush1.bf16.msra.mxu0 0
        %914 = vmatprep.subr.bf16.mxu0 0
        %915 = vmatpush1.bf16.msra.mxu0 0
        %916 = vmatprep.mubr.bf16.mxu0 0
        %917 = vmatmul.mubr.bf16.gmra.mrb[0].mxu0 %v528
        %v918 = vpop.f32.mrb[0].mxu0
        %v919 = vadd.f32 %v783, %v918
        %v920 = vpop.f32.mrb[0].mxu0
        %v921 = vpop.f32.mrb[0].mxu0
        %v922 = vadd.f32 %v786, %v921
        %v923 = vpop.f32.mrb[0].mxu0
        %924 = vmatprep.mubr.bf16.mxu0 0
        %925 = vmatmul.mubr.bf16.gmra.mrb[0].mxu0 %v531
        %v926 = vpop.f32.mrb[0].mxu0
        %v927 = vadd.f32 %v791, %v926
        %v928 = vpop.f32.mrb[0].mxu0
        %v929 = vpop.f32.mrb[0].mxu0
        %v930 = vadd.f32 %v794, %v929
        %v931 = vpop.f32.mrb[0].mxu0
        %932 = vmatprep.mubr.bf16.mxu0 0
        %933 = vmatmul.mubr.bf16.gmra.mrb[0].mxu0 %v534
        %v934 = vpop.f32.mrb[0].mxu0
        %v935 = vadd.f32 %v799, %v934
        %v936 = vpop.f32.mrb[0].mxu0
        %v937 = vpop.f32.mrb[0].mxu0
        %v938 = vadd.f32 %v802, %v937
        %v939 = vpop.f32.mrb[0].mxu0
        %940 = vmatprep.mubr.bf16.mxu0 0
        %941 = vmatmul.mubr.bf16.gmra.mrb[0].mxu0 %v537
        %v942 = vpop.f32.mrb[0].mxu0
        %v943 = vadd.f32 %v807, %v942
        %v944 = vpop.f32.mrb[0].mxu0
        %v945 = vpop.f32.mrb[0].mxu0
        %v946 = vadd.f32 %v810, %v945
        %v947 = vpop.f32.mrb[0].mxu0
        %948 = vmatprep.mubr.bf16.mxu0 0
        %949 = vmatmul.mubr.bf16.gmra.mrb[0].mxu0 %v540
        %v950 = vpop.f32.mrb[0].mxu0
        %v951 = vadd.f32 %v815, %v950
        %v952 = vpop.f32.mrb[0].mxu0
        %v953 = vpop.f32.mrb[0].mxu0
        %v954 = vadd.f32 %v818, %v953
        %v955 = vpop.f32.mrb[0].mxu0
        %956 = vmatprep.mubr.bf16.mxu0 0
        %957 = vmatmul.mubr.bf16.gmra.mrb[0].mxu0 %v543
        %v958 = vpop.f32.mrb[0].mxu0
        %v959 = vadd.f32 %v823, %v958
        %v960 = vpop.f32.mrb[0].mxu0
        %v961 = vpop.f32.mrb[0].mxu0
        %v962 = vadd.f32 %v826, %v961
        %v963 = vpop.f32.mrb[0].mxu0
        %964 = vmatprep.mubr.bf16.mxu0 0
        %965 = vmatmul.mubr.bf16.gmra.mrb[0].mxu0 %v546
        %v966 = vpop.f32.mrb[0].mxu0
        %v967 = vadd.f32 %v831, %v966
        %v968 = vpop.f32.mrb[0].mxu0
        %v969 = vpop.f32.mrb[0].mxu0
        %v970 = vadd.f32 %v834, %v969
        %v971 = vpop.f32.mrb[0].mxu0
        %972 = vmatprep.mubr.bf16.mxu0 0
        %973 = vmatmul.mubr.bf16.gmra.mrb[0].mxu0 %v549
        %v974 = vpop.f32.mrb[0].mxu0
        %v975 = vadd.f32 %v839, %v974
        %v976 = vpop.f32.mrb[0].mxu0
        %v977 = vpop.f32.mrb[0].mxu0
        %v978 = vadd.f32 %v842, %v977
        %v979 = vpop.f32.mrb[0].mxu0
        %980 = vmatprep.mubr.bf16.mxu0 0
        %981 = vmatmul.mubr.bf16.gmra.mrb[0].mxu0 %v552
        %v982 = vpop.f32.mrb[0].mxu0
        %v983 = vadd.f32 %v847, %v982
        %v984 = vpop.f32.mrb[0].mxu0
        %v985 = vpop.f32.mrb[0].mxu0
        %v986 = vadd.f32 %v850, %v985
        %v987 = vpop.f32.mrb[0].mxu0
        %988 = vmatprep.mubr.bf16.mxu0 0
        %989 = vmatmul.mubr.bf16.gmra.mrb[0].mxu0 %v555
        %v990 = vpop.f32.mrb[0].mxu0
        %v991 = vadd.f32 %v855, %v990
        %v992 = vpop.f32.mrb[0].mxu0
        %v993 = vpop.f32.mrb[0].mxu0
        %v994 = vadd.f32 %v858, %v993
        %v995 = vpop.f32.mrb[0].mxu0
        %996 = vmatprep.mubr.bf16.mxu0 0
        %997 = vmatmul.mubr.bf16.gmra.mrb[0].mxu0 %v558
        %v998 = vpop.f32.mrb[0].mxu0
        %v999 = vadd.f32 %v863, %v998
        %v1000 = vpop.f32.mrb[0].mxu0
        %v1001 = vpop.f32.mrb[0].mxu0
        %v1002 = vadd.f32 %v866, %v1001
        %v1003 = vpop.f32.mrb[0].mxu0
        %1004 = vmatprep.mubr.bf16.mxu0 0
        %1005 = vmatmul.mubr.bf16.gmra.mrb[0].mxu0 %v561
        %v1006 = vpop.f32.mrb[0].mxu0
        %v1007 = vadd.f32 %v871, %v1006
        %v1008 = vpop.f32.mrb[0].mxu0
        %v1009 = vpop.f32.mrb[0].mxu0
        %v1010 = vadd.f32 %v874, %v1009
        %v1011 = vpop.f32.mrb[0].mxu0
        %1012 = vmatprep.mubr.bf16.mxu0 0
        %1013 = vmatmul.mubr.bf16.gmra.mrb[0].mxu0 %v564
        %v1014 = vpop.f32.mrb[0].mxu0
        %v1015 = vadd.f32 %v879, %v1014
        %v1016 = vpop.f32.mrb[0].mxu0
        %v1017 = vpop.f32.mrb[0].mxu0
        %v1018 = vpop.f32.mrb[0].mxu0
        %1019 = vdwg.mxu0
        %v1020 = vmax.f32 %v919, 0.0
        %v1021 = vmax.f32 %v922, 0.0
        %v1022 = vmax.f32 %v927, 0.0
        %v1023 = vmax.f32 %v930, 0.0
        %v1024 = vmax.f32 %v935, 0.0
        %v1025 = vmax.f32 %v938, 0.0
        %v1026 = vmax.f32 %v943, 0.0
        %v1027 = vmax.f32 %v946, 0.0
        %v1028 = vmax.f32 %v951, 0.0
        %v1029 = vmax.f32 %v954, 0.0
        %v1030 = vmax.f32 %v959, 0.0
        %v1031 = vmax.f32 %v962, 0.0
        %v1032 = vmax.f32 %v967, 0.0
        %v1033 = vmax.f32 %v970, 0.0
        %v1034 = vmax.f32 %v975, 0.0
        %v1035 = vmax.f32 %v978, 0.0
        %v1036 = vmax.f32 %v983, 0.0
        %v1037 = vmax.f32 %v986, 0.0
        %v1038 = vmax.f32 %v991, 0.0
        %v1039 = vmax.f32 %v994, 0.0
        %v1040 = vmax.f32 %v999, 0.0
        %v1041 = vmax.f32 %v1002, 0.0
        %v1042 = vmax.f32 %v1007, 0.0
        %v1043 = vmax.f32 %v1010, 0.0
        %v1044 = vmax.f32 %v1015, 0.0
        %v1045 = vpack.c.bf16 %v1021, %v1020
        %v1046 = vpack.c.bf16 %v1023, %v1022
        %v1047 = vpack.c.bf16 %v1025, %v1024
        %v1048 = vpack.c.bf16 %v1027, %v1026
        %v1049 = vpack.c.bf16 %v1029, %v1028
        %v1050 = vpack.c.bf16 %v1031, %v1030
        %v1051 = vpack.c.bf16 %v1033, %v1032
        %v1052 = vpack.c.bf16 %v1035, %v1034
        %v1053 = vpack.c.bf16 %v1037, %v1036
        %v1054 = vpack.c.bf16 %v1039, %v1038
        %v1055 = vpack.c.bf16 %v1041, %v1040
        %v1056 = vpack.c.bf16 %v1043, %v1042
        %v1057 = vpack.c.bf16 %v1044, %v1044
        %1059 = vset.pattern.permute.xlu0 0
        %1060 = vperm.xlu0 %1059, %v342
        %v1061 = vpop.permute.xlu0 %1060
        %1064 = vset.pattern.permute.xlu0 0
        %1065 = vperm.xlu0 %1064, %v343
        %v1066 = vpop.permute.xlu0 %1065
        %1069 = vset.pattern.permute.xlu0 0
        %1070 = vperm.xlu0 %1069, %v344
        %v1071 = vpop.permute.xlu0 %1070
        %v1076 = vunpack.c.l.b16 %v339
        %v1077 = vunpack.c.l.b16 %v340
        %v1078 = vunpack.c.l.b16 %v341
        %v1079 = vpack.c.b16 %v1077, %v1076
        %v1080 = vpack.c.b16 %v1078, %v1078
        %1083 = vmatprep.subr.bf16.mxu0 0
        %1084 = vmatpush1.bf16.xpose.msra.mxu0 %v1045
        %1085 = vmatprep.subr.bf16.mxu0 0
        %1086 = vmatpush1.bf16.xpose.msra.mxu0 %v1046
        %1087 = vmatprep.subr.bf16.mxu0 0
        %1088 = vmatpush1.bf16.xpose.msra.mxu0 %v1047
        %1089 = vmatprep.subr.bf16.mxu0 0
        %1090 = vmatpush1.bf16.xpose.msra.mxu0 %v1048
        %1091 = vmatprep.subr.bf16.mxu0 0
        %1092 = vmatpush1.bf16.xpose.msra.mxu0 %v1049
        %1093 = vmatprep.subr.bf16.mxu0 0
        %1094 = vmatpush1.bf16.xpose.msra.mxu0 %v1050
        %1095 = vmatprep.subr.bf16.mxu0 0
        %1096 = vmatpush1.bf16.xpose.msra.mxu0 %v1051
        %1097 = vmatprep.subr.bf16.mxu0 0
        %1098 = vmatpush1.bf16.xpose.msra.mxu0 %v1052
        %1099 = vmatprep.subr.bf16.mxu0 0
        %1100 = vmatpush1.bf16.xpose.msra.mxu0 %v1053
        %1101 = vmatprep.subr.bf16.mxu0 0
        %1102 = vmatpush1.bf16.xpose.msra.mxu0 %v1054
        %1103 = vmatprep.subr.bf16.mxu0 0
        %1104 = vmatpush1.bf16.xpose.msra.mxu0 %v1055
        %1105 = vmatprep.subr.bf16.mxu0 0
        %1106 = vmatpush1.bf16.xpose.msra.mxu0 %v1056
        %1107 = vmatprep.subr.bf16.mxu0 0
        %1108 = vmatpush1.bf16.xpose.msra.mxu0 %v1057
        %1109 = vmatprep.subr.bf16.mxu0 0
        %1110 = vmatpush1.bf16.xpose.msra.mxu0 0
        %1111 = vmatprep.subr.bf16.mxu0 0
        %1112 = vmatpush1.bf16.xpose.msra.mxu0 0
        %1113 = vmatprep.subr.bf16.mxu0 0
        %1114 = vmatpush1.bf16.xpose.msra.mxu0 0
        %1115 = vmatprep.mubr.bf16.mxu0 0
        %1116 = vmatmul.mubr.bf16.gmra.mrb[0].mxu0 %v1079
        %v1117 = vpop.f32.mrb[0].mxu0
        %v1118 = vadd.f32 %v1061, %v1117
        %v1119 = vpop.f32.mrb[0].mxu0
        %v1120 = vadd.f32 %v1061, %v1119
        %v1121 = vpop.f32.mrb[0].mxu0
        %v1122 = vadd.f32 %v1066, %v1121
        %v1123 = vpop.f32.mrb[0].mxu0
        %v1124 = vadd.f32 %v1066, %v1123
        %1125 = vmatprep.mubr.bf16.mxu0 0
        %1126 = vmatmul.mubr.bf16.gmra.mrb[0].mxu0 %v1080
        %v1127 = vpop.f32.mrb[0].mxu0
        %v1128 = vadd.f32 %v1071, %v1127
        %v1129 = vpop.f32.mrb[0].mxu0
        %v1130 = vadd.f32 %v1071, %v1129
        %v1131 = vpop.f32.mrb[0].mxu0
        %v1132 = vpop.f32.mrb[0].mxu0
        %1133 = vdwg.mxu0
        %1134 = vst [vmem:[%s287] sm:$0xff] %v1118
        %vm1135 = vcmask 588800
        %1136 = vst.msk [vmem:[%s287 + $0x8] sm:$0xff] %vm1135, %v1120
        %1137 = vst [vmem:[%s287 + $0x10] sm:$0xff] %v1122
        %1138 = vst.msk [vmem:[%s287 + $0x18] sm:$0xff] %vm1135, %v1124
        %1139 = vst [vmem:[%s287 + $0x20] sm:$0x7f] %v1128
        %vm1140 = vcmask 587776
        %1141 = vst.msk [vmem:[%s287 + $0x28] sm:$0x7f] %vm1140, %v1130
        %s1142 = smul.u32 2, %s25
        %p1143 = scmp.lt.s32.totalorder %s24, 1
        %s1144 = scalar_select %p1143, %s24, 1
        %p1145 = scmp.lt.s32.totalorder %s1142, 1
        %s1146 = scalar_select %p1145, %s1142, 1
        %s1147 = smul.addr %s1144, 6
        %s1148 = sadd.s32 %s1146, %s1147
        %s1149 = smul.addr %s1148, 8
        %s1150 = scalar_lea.vmem %s5, %s1149
        // Predicated region
        $region49: #{tpu_custom_call.1} parent=39 // pred_check
          %p1151 = pneg %p164
        $region50: #{tpu_custom_call.1} parent=39 // pred_check_branch
          %1153 = sbr.rel (%p1151) target = $region52
        $region51: #{tpu_custom_call.1} parent=39 // pred_region
          %s1154 = smul.u32 2, %s25
        $region52: #{tpu_custom_call.1} parent=39 // pred_fallthru
          _
      $region40: #{tpu_custom_call.1} parent=5 // pred_fallthru
        _
      %p1155 = scmp.le.s32.totalorder 2, %s15
      // Predicated region
      $region53: #{tpu_custom_call.1} parent=5 // pred_check
        %p1156 = pneg %p1155
      $region54: #{tpu_custom_call.1} parent=5 // pred_check_branch
        %1158 = sbr.rel (%p1156) target = $region56
      $region55: #{tpu_custom_call.1} parent=5 // pred_region
        %s1159 = ssub.s32 %s15, 2
        // Predicated region
        $region57: #{tpu_custom_call.1} parent=55 // pred_check
          %p1160 = pneg %p170
        $region58: #{tpu_custom_call.1} parent=55 // pred_check_branch
          %1162 = sbr.rel (%p1160) target = $region60
        $region59: #{tpu_custom_call.1} parent=55 // pred_region
          %s1163 = smul.u32 2, %s27
          %p1164 = scmp.lt.s32.totalorder %s26, 1
          %s1165 = scalar_select %p1164, %s26, 1
          %p1166 = scmp.lt.s32.totalorder %s1163, 1
          %s1167 = scalar_select %p1166, %s1163, 1
          %s1168 = smul.addr %s1165, 6
          %s1169 = sadd.s32 %s1167, %s1168
          %s1170 = smul.addr %s1169, 8
          %s1171 = scalar_lea.vmem %s5, %s1170
        $region60: #{tpu_custom_call.1} parent=55 // pred_fallthru
          _
      $region56: #{tpu_custom_call.1} parent=5 // pred_fallthru
        _
    $region6: #{tpu_custom_call.1} parent=1 // loop_footer
      %s19 = sadd.s32 1, %s15
    $region7: #{tpu_custom_call.1} parent=1 // loop_footer_branch
      %14 = sbr.rel target = $region3
    $region8: #{tpu_custom_call.1} parent=1 // loop_exit
      _
    %1172 = vsyncpa [#allocation3], 1
    %s1173 = scalar_lea.sflag [#allocation3], 1
    %1174 = vsyncpa %s1173, 1
    %1175 = vsyncpa [#allocation5], 1

</llo_original>
